<compile_context>
chip_gen: v5e
topology: v5e:2x2
jax: 0.10.0
libtpu: 0.0.40
codegen_flags: <defaults>
</compile_context>

<pallas_src>
import numpy as np
import jax
import jax.numpy as jnp
from jax.experimental import pallas as pl
from jax.experimental.pallas import tpu as pltpu


def _round_up(a, b):
    return (a + b - 1) // b * b


def _cores_per_device():
    """Best-effort TensorCore count per chip. Only used for tile heuristics."""
    try:
        kind = jax.devices()[0].device_kind.lower()
    except Exception:
        return 1
    # Single-TensorCore generations first ("v5 lite" contains "v5" as well).
    if any(t in kind for t in ("v2", "v3", "lite", "v5e", "v6e", "v6")):
        return 1
    # Megacore / dual-TensorCore generations (v4, v5p, v7x).
    if any(t in kind for t in ("v4", "v5p", "v5", "7")):
        return 2
    return 1


def _pick_block_rows(m_rows, itemsize, cores):
    """Rows (of 128 lanes) per grid step, derived from a VMEM budget.

    Double-buffered footprint per step:
        (16 input planes + 4 output planes) * block_m * 128 * itemsize * 2
    kept under ~20 MiB  ->  block_m = 1024 (f32) / 2048 (bf16),
    safe for v7x (32 MiB scoped default, 64 MiB physical) and v5e/v6e.
    """
    bytes_per_row = (16 + 4) * 128 * itemsize * 2
    budget = 20 * 1024 * 1024
    bm = max(8, (budget // bytes_per_row) // 8 * 8)
    if cores > 1:
        # Dual-TensorCore chips: aim for >= 2*cores grid steps so the
        # "parallel" grid axis shards evenly across cores, but never shrink a
        # tile below ~64 rows just to get more steps.
        target_steps = 2 * cores
        if m_rows >= 64 * target_steps:
            bm = min(bm, _round_up(pl.cdiv(m_rows, target_steps), 8))
    # If the whole problem fits in one tile, use a full-extent block
    # (legal for any row count, including non-multiples of 8).
    return min(bm, m_rows)


def _qmaxamp_pool_kernel(x_ref, o_ref):
    """x_ref: (4 window positions, 4 components, block_m, 128)
       o_ref: (4 components, block_m, 128)"""

    def load_window(p):
        # Static leading-dim indexing -> contiguous (block_m, 128) slabs.
        return (x_ref[p, 0], x_ref[p, 1], x_ref[p, 2], x_ref[p, 3])

    def amp2(comps):
        # Squared quaternion amplitude in f32 — argmax is invariant under sqrt.
        r, i, j, k = (c.astype(jnp.float32) for c in comps)
        return r * r + i * i + j * j + k * k

    best = load_window(0)
    best_amp2 = amp2(best)

    # Statically unrolled loop over the remaining 3 positions of the 2x2 window.
    for p in range(1, 4):
        cand = load_window(p)
        cand_amp2 = amp2(cand)
        take = cand_amp2 > best_amp2      # strict ">" == first-max tie-break (argmax)
        best_amp2 = jnp.maximum(best_amp2, cand_amp2)
        best = tuple(jnp.where(take, c_new, c_old)
                     for c_new, c_old in zip(cand, best))

    o_ref[0] = best[0]
    o_ref[1] = best[1]
    o_ref[2] = best[2]
    o_ref[3] = best[3]


def quaternion_max_amp_pool2d(x, *, block_m=None, interpret=False):
    """Pallas TPU QuaternionMaxAmpPool2d forward (kernel_size=2, stride=2).

    I/O dtype is preserved (pass bf16 to halve HBM traffic); the selection
    metric is computed in f32 inside the kernel.
    """
    # TODO(synk): general kernel_size/stride and the `same=True` adaptive-padding
    # path are not implemented; the module defaults (k=2, s=2, no padding) are.
    bs, c, h, w = x.shape
    assert c % 4 == 0, "channel count must be a multiple of 4 (quaternion layout)"
    cq = c // 4
    oh, ow = h // 2, w // 2
    if oh == 0 or ow == 0:
        return jnp.zeros((bs, c, oh, ow), dtype=x.dtype)
    # torch.unfold drops trailing rows/cols that don't fill a full window.
    x = x[:, :, : oh * 2, : ow * 2]

    # ---- layout plumbing (outside the kernel, plain XLA ops) ----
    # (bs, comp, cq, oh, dh, ow, dw) -> (dh, dw, comp, bs, cq, oh, ow):
    # window position & component become leading dims, pixels become one flat
    # trailing axis so the kernel sees lane-dense (block_m, 128) slabs.
    # TODO(synk): fold this transpose (and the output un-transpose) into the
    # kernel via BlockSpec indexing + in-kernel XLU shuffles when ow % 128 == 0.
    xr = x.reshape(bs, 4, cq, oh, 2, ow, 2)
    xt = jnp.transpose(xr, (4, 6, 1, 0, 2, 3, 5))
    n = bs * cq * oh * ow
    x_flat = xt.reshape(4, 4, n)          # (window position, component, pixel)

    # ---- tiling: lane-dense (block_m, 128) slabs over the pixel axis ----
    # Pad only to a multiple of 128 lanes (usually a no-op); the last grid
    # block may be ragged (Pallas masks the partial output block).
    n_pad = _round_up(n, 128)
    if n_pad != n:
        x_flat = jnp.pad(x_flat, ((0, 0), (0, 0), (0, n_pad - n)))
    m_rows = n_pad // 128
    if block_m is None:
        bm = _pick_block_rows(m_rows, x.dtype.itemsize, _cores_per_device())
    else:
        bm = min(block_m, m_rows)
    x_slab = x_flat.reshape(4, 4, m_rows, 128)

    grid = (pl.cdiv(m_rows, bm),)
    out_slab = pl.pallas_call(
        _qmaxamp_pool_kernel,
        out_shape=jax.ShapeDtypeStruct((4, m_rows, 128), x.dtype),
        grid_spec=pltpu.PrefetchScalarGridSpec(
            num_scalar_prefetch=0,
            grid=grid,
            in_specs=[pl.BlockSpec((4, 4, bm, 128), lambda m: (0, 0, m, 0))],
            out_specs=pl.BlockSpec((4, bm, 128), lambda m: (0, m, 0)),
        ),
        compiler_params=pltpu.CompilerParams(
            dimension_semantics=("parallel",),
            # Covers the <= ~20 MiB double-buffered footprint everywhere
            # (v5e scoped default is only 16 MiB; v7x physical VMEM is 64 MiB).
            vmem_limit_bytes=32 * 1024 * 1024,
        ),
        interpret=interpret,
    )(x_slab)

    out_flat = out_slab.reshape(4, n_pad)[:, :n]
    out = (out_flat.reshape(4, bs, cq, oh, ow)
                   .transpose(1, 0, 2, 3, 4)
                   .reshape(bs, c, oh, ow))
    return out


def quaternion_max_amp_pool2d_reference(x):
    """Pure-JAX mirror of the PyTorch forward.

    The PyTorch module takes argmax of sqrt(r^2+i^2+j^2+k^2); sqrt is monotone
    so the selected window position is identical — the sqrt is omitted here
    (and in the kernel), and the metric is computed in f32 like the kernel."""
    bs, c, h, w = x.shape
    cq = c // 4
    oh, ow = h // 2, w // 2
    x = x[:, :, : oh * 2, : ow * 2]
    comps = x.reshape(bs, 4, cq, oh, 2, ow, 2).transpose(0, 1, 2, 3, 5, 4, 6)
    comps = comps.reshape(bs, 4, cq, oh, ow, 4)          # window flattened last
    r, i, j, k = (comps[:, t].astype(jnp.float32) for t in range(4))
    amp2 = r * r + i * i + j * j + k * k                 # same op order as kernel
    idx = jnp.argmax(amp2, axis=-1)                      # (bs, cq, oh, ow)
    gathered = jnp.take_along_axis(
        comps, idx[:, None, :, :, :, None], axis=-1)[..., 0]
    return gathered.reshape(bs, c, oh, ow)


if __name__ == "__main__":
    key = jax.random.PRNGKey(0)
    k1, k2, k3, k4 = jax.random.split(key, 4)

    def _check(x, **kw):
        out = jax.block_until_ready(quaternion_max_amp_pool2d(x, **kw))
        ref = quaternion_max_amp_pool2d_reference(x)
        bs, c, h, w = x.shape
        assert out.shape == (bs, c, h // 2, w // 2), out.shape
        assert out.dtype == x.dtype, out.dtype
        assert np.array_equal(np.asarray(out), np.asarray(ref)), "mismatch vs reference"
        return out

    # Small shape consistent with the module: batch=2, channels=8 (2 quaternions), 16x16.
    _check(jax.random.normal(k1, (2, 8, 16, 16), dtype=jnp.float32))

    # Larger case: default path (single VMEM-budget tile) and an explicit small
    # tile exercising a multi-step grid with a ragged last block (48 -> 32+16 rows).
    x2 = jax.random.normal(k2, (2, 12, 64, 64), dtype=jnp.float32)
    _check(x2)
    _check(x2, block_m=32)

    # bf16 I/O is preserved end-to-end (selection metric still f32 in-kernel).
    _check(jax.random.normal(k3, (2, 8, 32, 32)).astype(jnp.bfloat16))

    # Odd spatial size: trailing row/col dropped (torch.unfold semantics) and
    # the 24-pixel problem is padded up to a single 128-lane row.
    _check(jax.random.normal(k4, (2, 4, 7, 9), dtype=jnp.float32))

    print("KERNEL_OK")
</pallas_src>

<mosaic_0001>
module attributes {stable_mosaic.version = 11 : i64} {
  func.func @_qmaxamp_pool_kernel(%arg0: i32, %arg1: memref<4x4x2x128xf32, #tpu.memory_space<vmem>>, %arg2: memref<4x2x128xf32, #tpu.memory_space<vmem>>) attributes {dimension_semantics = [#tpu.dimension_semantics<parallel>], iteration_bounds = array<i64: 1>, scalar_prefetch = 0 : i64, scratch_operands = 0 : i64, tpu.core_type = #tpu.core_type<tc>, window_params = [{transform_indices = @transform_0, window_bounds = array<i64: 4, 4, 2, 128>}, {transform_indices = @transform_1, window_bounds = array<i64: 4, 2, 128>}]} {
    %c0 = arith.constant 0 : index
    %c0_0 = arith.constant 0 : index
    %c0_1 = arith.constant 0 : index
    %c0_2 = arith.constant 0 : index
    %0 = vector.load %arg1[%c0, %c0_0, %c0_1, %c0_2] : memref<4x4x2x128xf32, #tpu.memory_space<vmem>>, vector<1x1x2x128xf32>
    %1 = vector.shape_cast %0 : vector<1x1x2x128xf32> to vector<2x128xf32>
    %c0_3 = arith.constant 0 : index
    %c1 = arith.constant 1 : index
    %c0_4 = arith.constant 0 : index
    %c0_5 = arith.constant 0 : index
    %2 = vector.load %arg1[%c0_3, %c1, %c0_4, %c0_5] : memref<4x4x2x128xf32, #tpu.memory_space<vmem>>, vector<1x1x2x128xf32>
    %3 = vector.shape_cast %2 : vector<1x1x2x128xf32> to vector<2x128xf32>
    %c0_6 = arith.constant 0 : index
    %c2 = arith.constant 2 : index
    %c0_7 = arith.constant 0 : index
    %c0_8 = arith.constant 0 : index
    %4 = vector.load %arg1[%c0_6, %c2, %c0_7, %c0_8] : memref<4x4x2x128xf32, #tpu.memory_space<vmem>>, vector<1x1x2x128xf32>
    %5 = vector.shape_cast %4 : vector<1x1x2x128xf32> to vector<2x128xf32>
    %c0_9 = arith.constant 0 : index
    %c3 = arith.constant 3 : index
    %c0_10 = arith.constant 0 : index
    %c0_11 = arith.constant 0 : index
    %6 = vector.load %arg1[%c0_9, %c3, %c0_10, %c0_11] : memref<4x4x2x128xf32, #tpu.memory_space<vmem>>, vector<1x1x2x128xf32>
    %7 = vector.shape_cast %6 : vector<1x1x2x128xf32> to vector<2x128xf32>
    %8 = arith.mulf %1, %1 : vector<2x128xf32>
    %9 = arith.mulf %3, %3 : vector<2x128xf32>
    %10 = arith.addf %8, %9 : vector<2x128xf32>
    %11 = arith.mulf %5, %5 : vector<2x128xf32>
    %12 = arith.addf %10, %11 : vector<2x128xf32>
    %13 = arith.mulf %7, %7 : vector<2x128xf32>
    %14 = arith.addf %12, %13 : vector<2x128xf32>
    %c1_12 = arith.constant 1 : index
    %c0_13 = arith.constant 0 : index
    %c0_14 = arith.constant 0 : index
    %c0_15 = arith.constant 0 : index
    %15 = vector.load %arg1[%c1_12, %c0_13, %c0_14, %c0_15] : memref<4x4x2x128xf32, #tpu.memory_space<vmem>>, vector<1x1x2x128xf32>
    %16 = vector.shape_cast %15 : vector<1x1x2x128xf32> to vector<2x128xf32>
    %c1_16 = arith.constant 1 : index
    %c1_17 = arith.constant 1 : index
    %c0_18 = arith.constant 0 : index
    %c0_19 = arith.constant 0 : index
    %17 = vector.load %arg1[%c1_16, %c1_17, %c0_18, %c0_19] : memref<4x4x2x128xf32, #tpu.memory_space<vmem>>, vector<1x1x2x128xf32>
    %18 = vector.shape_cast %17 : vector<1x1x2x128xf32> to vector<2x128xf32>
    %c1_20 = arith.constant 1 : index
    %c2_21 = arith.constant 2 : index
    %c0_22 = arith.constant 0 : index
    %c0_23 = arith.constant 0 : index
    %19 = vector.load %arg1[%c1_20, %c2_21, %c0_22, %c0_23] : memref<4x4x2x128xf32, #tpu.memory_space<vmem>>, vector<1x1x2x128xf32>
    %20 = vector.shape_cast %19 : vector<1x1x2x128xf32> to vector<2x128xf32>
    %c1_24 = arith.constant 1 : index
    %c3_25 = arith.constant 3 : index
    %c0_26 = arith.constant 0 : index
    %c0_27 = arith.constant 0 : index
    %21 = vector.load %arg1[%c1_24, %c3_25, %c0_26, %c0_27] : memref<4x4x2x128xf32, #tpu.memory_space<vmem>>, vector<1x1x2x128xf32>
    %22 = vector.shape_cast %21 : vector<1x1x2x128xf32> to vector<2x128xf32>
    %23 = arith.mulf %16, %16 : vector<2x128xf32>
    %24 = arith.mulf %18, %18 : vector<2x128xf32>
    %25 = arith.addf %23, %24 : vector<2x128xf32>
    %26 = arith.mulf %20, %20 : vector<2x128xf32>
    %27 = arith.addf %25, %26 : vector<2x128xf32>
    %28 = arith.mulf %22, %22 : vector<2x128xf32>
    %29 = arith.addf %27, %28 : vector<2x128xf32>
    %30 = arith.cmpf ogt, %29, %14 : vector<2x128xf32>
    %31 = arith.maximumf %14, %29 : vector<2x128xf32>
    %32 = arith.select %30, %16, %1 : vector<2x128xi1>, vector<2x128xf32>
    %33 = arith.select %30, %18, %3 : vector<2x128xi1>, vector<2x128xf32>
    %34 = arith.select %30, %20, %5 : vector<2x128xi1>, vector<2x128xf32>
    %35 = arith.select %30, %22, %7 : vector<2x128xi1>, vector<2x128xf32>
    %c2_28 = arith.constant 2 : index
    %c0_29 = arith.constant 0 : index
    %c0_30 = arith.constant 0 : index
    %c0_31 = arith.constant 0 : index
    %36 = vector.load %arg1[%c2_28, %c0_29, %c0_30, %c0_31] : memref<4x4x2x128xf32, #tpu.memory_space<vmem>>, vector<1x1x2x128xf32>
    %37 = vector.shape_cast %36 : vector<1x1x2x128xf32> to vector<2x128xf32>
    %c2_32 = arith.constant 2 : index
    %c1_33 = arith.constant 1 : index
    %c0_34 = arith.constant 0 : index
    %c0_35 = arith.constant 0 : index
    %38 = vector.load %arg1[%c2_32, %c1_33, %c0_34, %c0_35] : memref<4x4x2x128xf32, #tpu.memory_space<vmem>>, vector<1x1x2x128xf32>
    %39 = vector.shape_cast %38 : vector<1x1x2x128xf32> to vector<2x128xf32>
    %c2_36 = arith.constant 2 : index
    %c2_37 = arith.constant 2 : index
    %c0_38 = arith.constant 0 : index
    %c0_39 = arith.constant 0 : index
    %40 = vector.load %arg1[%c2_36, %c2_37, %c0_38, %c0_39] : memref<4x4x2x128xf32, #tpu.memory_space<vmem>>, vector<1x1x2x128xf32>
    %41 = vector.shape_cast %40 : vector<1x1x2x128xf32> to vector<2x128xf32>
    %c2_40 = arith.constant 2 : index
    %c3_41 = arith.constant 3 : index
    %c0_42 = arith.constant 0 : index
    %c0_43 = arith.constant 0 : index
    %42 = vector.load %arg1[%c2_40, %c3_41, %c0_42, %c0_43] : memref<4x4x2x128xf32, #tpu.memory_space<vmem>>, vector<1x1x2x128xf32>
    %43 = vector.shape_cast %42 : vector<1x1x2x128xf32> to vector<2x128xf32>
    %44 = arith.mulf %37, %37 : vector<2x128xf32>
    %45 = arith.mulf %39, %39 : vector<2x128xf32>
    %46 = arith.addf %44, %45 : vector<2x128xf32>
    %47 = arith.mulf %41, %41 : vector<2x128xf32>
    %48 = arith.addf %46, %47 : vector<2x128xf32>
    %49 = arith.mulf %43, %43 : vector<2x128xf32>
    %50 = arith.addf %48, %49 : vector<2x128xf32>
    %51 = arith.cmpf ogt, %50, %31 : vector<2x128xf32>
    %52 = arith.maximumf %31, %50 : vector<2x128xf32>
    %53 = arith.select %51, %37, %32 : vector<2x128xi1>, vector<2x128xf32>
    %54 = arith.select %51, %39, %33 : vector<2x128xi1>, vector<2x128xf32>
    %55 = arith.select %51, %41, %34 : vector<2x128xi1>, vector<2x128xf32>
    %56 = arith.select %51, %43, %35 : vector<2x128xi1>, vector<2x128xf32>
    %c3_44 = arith.constant 3 : index
    %c0_45 = arith.constant 0 : index
    %c0_46 = arith.constant 0 : index
    %c0_47 = arith.constant 0 : index
    %57 = vector.load %arg1[%c3_44, %c0_45, %c0_46, %c0_47] : memref<4x4x2x128xf32, #tpu.memory_space<vmem>>, vector<1x1x2x128xf32>
    %58 = vector.shape_cast %57 : vector<1x1x2x128xf32> to vector<2x128xf32>
    %c3_48 = arith.constant 3 : index
    %c1_49 = arith.constant 1 : index
    %c0_50 = arith.constant 0 : index
    %c0_51 = arith.constant 0 : index
    %59 = vector.load %arg1[%c3_48, %c1_49, %c0_50, %c0_51] : memref<4x4x2x128xf32, #tpu.memory_space<vmem>>, vector<1x1x2x128xf32>
    %60 = vector.shape_cast %59 : vector<1x1x2x128xf32> to vector<2x128xf32>
    %c3_52 = arith.constant 3 : index
    %c2_53 = arith.constant 2 : index
    %c0_54 = arith.constant 0 : index
    %c0_55 = arith.constant 0 : index
    %61 = vector.load %arg1[%c3_52, %c2_53, %c0_54, %c0_55] : memref<4x4x2x128xf32, #tpu.memory_space<vmem>>, vector<1x1x2x128xf32>
    %62 = vector.shape_cast %61 : vector<1x1x2x128xf32> to vector<2x128xf32>
    %c3_56 = arith.constant 3 : index
    %c3_57 = arith.constant 3 : index
    %c0_58 = arith.constant 0 : index
    %c0_59 = arith.constant 0 : index
    %63 = vector.load %arg1[%c3_56, %c3_57, %c0_58, %c0_59] : memref<4x4x2x128xf32, #tpu.memory_space<vmem>>, vector<1x1x2x128xf32>
    %64 = vector.shape_cast %63 : vector<1x1x2x128xf32> to vector<2x128xf32>
    %65 = arith.mulf %58, %58 : vector<2x128xf32>
    %66 = arith.mulf %60, %60 : vector<2x128xf32>
    %67 = arith.addf %65, %66 : vector<2x128xf32>
    %68 = arith.mulf %62, %62 : vector<2x128xf32>
    %69 = arith.addf %67, %68 : vector<2x128xf32>
    %70 = arith.mulf %64, %64 : vector<2x128xf32>
    %71 = arith.addf %69, %70 : vector<2x128xf32>
    %72 = arith.cmpf ogt, %71, %52 : vector<2x128xf32>
    %73 = arith.select %72, %58, %53 : vector<2x128xi1>, vector<2x128xf32>
    %74 = arith.select %72, %60, %54 : vector<2x128xi1>, vector<2x128xf32>
    %75 = arith.select %72, %62, %55 : vector<2x128xi1>, vector<2x128xf32>
    %76 = arith.select %72, %64, %56 : vector<2x128xi1>, vector<2x128xf32>
    %c0_60 = arith.constant 0 : index
    %c0_61 = arith.constant 0 : index
    %c0_62 = arith.constant 0 : index
    %77 = vector.load %arg2[%c0_60, %c0_61, %c0_62] : memref<4x2x128xf32, #tpu.memory_space<vmem>>, vector<1x2x128xf32>
    %78 = vector.shape_cast %77 : vector<1x2x128xf32> to vector<2x128xf32>
    %79 = vector.shape_cast %73 : vector<2x128xf32> to vector<1x2x128xf32>
    tpu.vector_store %arg2[%c0_60, %c0_61, %c0_62], %79 {strides = array<i32>} : memref<4x2x128xf32, #tpu.memory_space<vmem>>, vector<1x2x128xf32>,
    %c1_63 = arith.constant 1 : index
    %c0_64 = arith.constant 0 : index
    %c0_65 = arith.constant 0 : index
    %80 = vector.load %arg2[%c1_63, %c0_64, %c0_65] : memref<4x2x128xf32, #tpu.memory_space<vmem>>, vector<1x2x128xf32>
    %81 = vector.shape_cast %80 : vector<1x2x128xf32> to vector<2x128xf32>
    %82 = vector.shape_cast %74 : vector<2x128xf32> to vector<1x2x128xf32>
    tpu.vector_store %arg2[%c1_63, %c0_64, %c0_65], %82 {strides = array<i32>} : memref<4x2x128xf32, #tpu.memory_space<vmem>>, vector<1x2x128xf32>,
    %c2_66 = arith.constant 2 : index
    %c0_67 = arith.constant 0 : index
    %c0_68 = arith.constant 0 : index
    %83 = vector.load %arg2[%c2_66, %c0_67, %c0_68] : memref<4x2x128xf32, #tpu.memory_space<vmem>>, vector<1x2x128xf32>
    %84 = vector.shape_cast %83 : vector<1x2x128xf32> to vector<2x128xf32>
    %85 = vector.shape_cast %75 : vector<2x128xf32> to vector<1x2x128xf32>
    tpu.vector_store %arg2[%c2_66, %c0_67, %c0_68], %85 {strides = array<i32>} : memref<4x2x128xf32, #tpu.memory_space<vmem>>, vector<1x2x128xf32>,
    %c3_69 = arith.constant 3 : index
    %c0_70 = arith.constant 0 : index
    %c0_71 = arith.constant 0 : index
    %86 = vector.load %arg2[%c3_69, %c0_70, %c0_71] : memref<4x2x128xf32, #tpu.memory_space<vmem>>, vector<1x2x128xf32>
    %87 = vector.shape_cast %86 : vector<1x2x128xf32> to vector<2x128xf32>
    %88 = vector.shape_cast %76 : vector<2x128xf32> to vector<1x2x128xf32>
    tpu.vector_store %arg2[%c3_69, %c0_70, %c0_71], %88 {strides = array<i32>} : memref<4x2x128xf32, #tpu.memory_space<vmem>>, vector<1x2x128xf32>,
    return
  }
  func.func @transform_0(%arg0: i32) -> (i32, i32, i32, i32) {
    %c0_i32 = arith.constant 0 : i32
    %c0_i32_0 = arith.constant 0 : i32
    %c0_i32_1 = arith.constant 0 : i32
    %c0_i32_2 = arith.constant 0 : i32
    return %c0_i32, %c0_i32_0, %arg0, %c0_i32_1 : i32, i32, i32, i32
  }
  func.func @transform_1(%arg0: i32) -> (i32, i32, i32) {
    %c0_i32 = arith.constant 0 : i32
    %c0_i32_0 = arith.constant 0 : i32
    %c0_i32_1 = arith.constant 0 : i32
    return %c0_i32, %arg0, %c0_i32_0 : i32, i32, i32
  }
}

</mosaic_0001>

<llo_original>
// kernel: tpu_custom_call.1
$region0: #{tpu_custom_call.1}
  #allocation0 [shape = 'u32[]', space=smem, size = 0x4, offset = 0x4, fixed_abs, tag = 'smem constant byte address 0x4 - core index']
  #allocation1 [shape = 'u32[72,128]{1,0:T(1,128)}', space=vmem, size = 0x9000, scoped, tag = 'internal scratch']
  %s0 = inlined_call_operand.hbm [shape: f32[4,4,2,128], index: 0, kind: input, shape index: {}]
  %s1 = inlined_call_operand.hbm [shape: f32[4,2,128], index: 1, kind: output, shape index: {}]
  %s2 = sld [smem:[#allocation0]]
  $region18: #{tpu_custom_call.1} parent=0
    _
  %s4 = ssub.s32 1, %s2
  %s5 = scalar_select 0, %s4, %s2
  $region1: #{tpu_custom_call.1} parent=0
    #allocation2 [shape = 'u8[16384]{0}', space=vmem, size = 0x4000, scoped, tag = 'input window, operand 0, single buffered']
    #allocation3 [shape = 's32[1]{0}', space=sflag, size = 0x4, scoped, tag = 'scoped memory for tpu_custom_call.1']
    #allocation4 [shape = 's32[1]{0}', space=sflag, size = 0x4, scoped, tag = 'scoped memory for tpu_custom_call.1']
    #allocation5 [shape = 'u8[4096]{0}', space=vmem, size = 0x1000, scoped, tag = 'output window, operand 0, single buffered']
    %6 = vsyncpa [#allocation3], 0
    %7 = vsyncpa [#allocation4], 0
    // Predicated region
    $region2: #{tpu_custom_call.1} parent=1 // pred_check
      _
    $region3: #{tpu_custom_call.1} parent=1 // pred_check_branch
      %9 = sbr.rel (0) target = $region5
    $region4: #{tpu_custom_call.1} parent=1 // pred_region
      %11 = vsyncadd [#allocation3], 0
      %s12 = sshll.u32 %s0, 4
      %s13 = int_to_ptr.hbm [resolvable:$true] %s12
      %s14 = sshll.u32 [#allocation2], 4
      %s15 = int_to_ptr.vmem [resolvable:$true] %s14
      %20 = dma.hbm_to_vmem [thread:$0]  %s13, 512, %s15, [#allocation3], 32, 32, 2
    $region5: #{tpu_custom_call.1} parent=1 // pred_fallthru
      _
    // Predicated region
    $region6: #{tpu_custom_call.1} parent=1 // pred_check
      _
    $region7: #{tpu_custom_call.1} parent=1 // pred_check_branch
      %22 = sbr.rel (0) target = $region9
    $region8: #{tpu_custom_call.1} parent=1 // pred_region
      %24 = dma.done [#allocation3], 512
    $region9: #{tpu_custom_call.1} parent=1 // pred_fallthru
      _
    %v25 = vld [vmem:[#allocation2] sm:$0x3]
    %s26 = scalar_lea.vmem [#allocation2], 2
    %v27 = vld [vmem:[%s26] sm:$0x3]
    %s28 = scalar_lea.vmem [#allocation2], 4
    %v29 = vld [vmem:[%s28] sm:$0x3]
    %s30 = scalar_lea.vmem [#allocation2], 6
    %v31 = vld [vmem:[%s30] sm:$0x3]
    %v32 = vmul.f32 %v25, %v25
    %v33 = vmul.f32 %v27, %v27
    %v34 = vadd.f32 %v32, %v33
    %v35 = vmul.f32 %v29, %v29
    %v36 = vadd.f32 %v34, %v35
    %v37 = vmul.f32 %v31, %v31
    %v38 = vadd.f32 %v36, %v37
    %s39 = scalar_lea.vmem [#allocation2], 8
    %v40 = vld [vmem:[%s39] sm:$0x3]
    %s41 = scalar_lea.vmem [#allocation2], 10
    %v42 = vld [vmem:[%s41] sm:$0x3]
    %s43 = scalar_lea.vmem [#allocation2], 12
    %v44 = vld [vmem:[%s43] sm:$0x3]
    %s45 = scalar_lea.vmem [#allocation2], 14
    %v46 = vld [vmem:[%s45] sm:$0x3]
    %v47 = vmul.f32 %v40, %v40
    %v48 = vmul.f32 %v42, %v42
    %v49 = vadd.f32 %v47, %v48
    %v50 = vmul.f32 %v44, %v44
    %v51 = vadd.f32 %v49, %v50
    %v52 = vmul.f32 %v46, %v46
    %v53 = vadd.f32 %v51, %v52
    %vm54 = vcmp.gt.f32.partialorder %v53, %v38
    %v55 = vmax.f32 %v38, %v53
    %v56 = vsel %vm54, %v40, %v25
    %v57 = vsel %vm54, %v42, %v27
    %v58 = vsel %vm54, %v44, %v29
    %v59 = vsel %vm54, %v46, %v31
    %s60 = scalar_lea.vmem [#allocation2], 16
    %v61 = vld [vmem:[%s60] sm:$0x3]
    %s62 = scalar_lea.vmem [#allocation2], 18
    %v63 = vld [vmem:[%s62] sm:$0x3]
    %s64 = scalar_lea.vmem [#allocation2], 20
    %v65 = vld [vmem:[%s64] sm:$0x3]
    %s66 = scalar_lea.vmem [#allocation2], 22
    %v67 = vld [vmem:[%s66] sm:$0x3]
    %v68 = vmul.f32 %v61, %v61
    %v69 = vmul.f32 %v63, %v63
    %v70 = vadd.f32 %v68, %v69
    %v71 = vmul.f32 %v65, %v65
    %v72 = vadd.f32 %v70, %v71
    %v73 = vmul.f32 %v67, %v67
    %v74 = vadd.f32 %v72, %v73
    %vm75 = vcmp.gt.f32.partialorder %v74, %v55
    %v76 = vmax.f32 %v55, %v74
    %v77 = vsel %vm75, %v61, %v56
    %v78 = vsel %vm75, %v63, %v57
    %v79 = vsel %vm75, %v65, %v58
    %v80 = vsel %vm75, %v67, %v59
    %s81 = scalar_lea.vmem [#allocation2], 24
    %v82 = vld [vmem:[%s81] sm:$0x3]
    %s83 = scalar_lea.vmem [#allocation2], 26
    %v84 = vld [vmem:[%s83] sm:$0x3]
    %s85 = scalar_lea.vmem [#allocation2], 28
    %v86 = vld [vmem:[%s85] sm:$0x3]
    %s87 = scalar_lea.vmem [#allocation2], 30
    %v88 = vld [vmem:[%s87] sm:$0x3]
    %v89 = vmul.f32 %v82, %v82
    %v90 = vmul.f32 %v84, %v84
    %v91 = vadd.f32 %v89, %v90
    %v92 = vmul.f32 %v86, %v86
    %v93 = vadd.f32 %v91, %v92
    %v94 = vmul.f32 %v88, %v88
    %v95 = vadd.f32 %v93, %v94
    %vm96 = vcmp.gt.f32.partialorder %v95, %v76
    %v97 = vsel %vm96, %v82, %v77
    %v98 = vsel %vm96, %v84, %v78
    %v99 = vsel %vm96, %v86, %v79
    %v100 = vsel %vm96, %v88, %v80
    %101 = vst [vmem:[#allocation5] sm:$0x3] %v97
    %s102 = scalar_lea.vmem [#allocation5], 2
    %103 = vst [vmem:[%s102] sm:$0x3] %v98
    %s104 = scalar_lea.vmem [#allocation5], 4
    %105 = vst [vmem:[%s104] sm:$0x3] %v99
    %s106 = scalar_lea.vmem [#allocation5], 6
    %107 = vst [vmem:[%s106] sm:$0x3] %v100
    // Predicated region
    $region10: #{tpu_custom_call.1} parent=1 // pred_check
      _
    $region11: #{tpu_custom_call.1} parent=1 // pred_check_branch
      %109 = sbr.rel (0) target = $region13
    $region12: #{tpu_custom_call.1} parent=1 // pred_region
      %111 = vsyncadd [#allocation4], 0
      %s112 = sshll.u32 [#allocation5], 4
      %s113 = int_to_ptr.vmem [resolvable:$true] %s112
      %s114 = sshll.u32 %s1, 4
      %s115 = int_to_ptr.hbm [resolvable:$true] %s114
      %120 = dma.vmem_to_hbm [thread:$0]  %s113, 128, %s115, [#allocation4], 32, 32, 2
    $region13: #{tpu_custom_call.1} parent=1 // pred_fallthru
      _
    // Predicated region
    $region14: #{tpu_custom_call.1} parent=1 // pred_check
      _
    $region15: #{tpu_custom_call.1} parent=1 // pred_check_branch
      %122 = sbr.rel (0) target = $region17
    $region16: #{tpu_custom_call.1} parent=1 // pred_region
      %124 = dma.done [#allocation4], 128
    $region17: #{tpu_custom_call.1} parent=1 // pred_fallthru
      _
    %125 = vsyncpa [#allocation3], 1
    %126 = vsyncpa [#allocation4], 1

</llo_original>
